<compile_context>
chip_gen: v6e
topology: v6e:2x2x1
jax: 0.10.0
libtpu: 0.0.40
codegen_flags: <defaults>
</compile_context>

<pallas_src>
import functools

import jax
import jax.numpy as jnp
from jax.experimental import pallas as pl
from jax.experimental.pallas import tpu as pltpu

LANE = 128


def _round_up(x, m):
    return (x + m - 1) // m * m


def _mlp_kernel(x_ref, w_ref, b_ref, o_ref, *, num_layers, in_dim):
    """Fused MLP on one VMEM-resident batch tile.

    x_ref: (TB, in_dim)  activation tile, true (unpadded) lane width
    w_ref: (L, P, P)     all layer weights, zero-padded, VMEM-resident
    b_ref: (L, 1, P)     all layer biases, zero-padded, VMEM-resident
    o_ref: (TB, P)       lane-dense output tile (wrapper slices valid columns)
    """
    w_dtype = w_ref.dtype
    # First layer: only the valid fan-in rows of the padded weight block.
    h = jnp.dot(x_ref[...].astype(w_dtype), w_ref[0, :in_dim, :],
                preferred_element_type=jnp.float32)
    h = h + b_ref[0].astype(jnp.float32)
    for i in range(1, num_layers):          # static unroll (num_layers is Python int)
        h = jnp.maximum(h, 0.0)             # ReLU after every layer except the last
        h = jnp.dot(h.astype(w_dtype), w_ref[i],
                    preferred_element_type=jnp.float32)
        h = h + b_ref[i].astype(jnp.float32)
    o_ref[...] = h.astype(o_ref.dtype)


def pack_nn_params(params, *, dtype=jnp.float32):
    """Zero-pad every (in,out) weight / (1,out) bias to a common 128-lane width
    and stack.  Call ONCE outside the hot path; the packed arrays are what the
    jitted forward consumes."""
    dims = [params[0][0].shape[0]] + [w.shape[1] for (w, _) in params]
    pad_dim = _round_up(max(dims), LANE)
    num_layers = len(params)
    w_stacked = jnp.zeros((num_layers, pad_dim, pad_dim), dtype)
    b_stacked = jnp.zeros((num_layers, 1, pad_dim), dtype)
    for i, (w, b) in enumerate(params):
        fan_in, fan_out = w.shape
        w_stacked = w_stacked.at[i, :fan_in, :fan_out].set(w.astype(dtype))
        b_stacked = b_stacked.at[i, :, :fan_out].set(b.astype(dtype))
    return w_stacked, b_stacked


def nn_forward_packed(w_stacked, b_stacked, x, *, out_dim, max_batch_tile=1024):
    """Replicates NN.forward with a single fused Pallas kernel.

    w_stacked: (L, P, P)  packed weights (see pack_nn_params)
    b_stacked: (L, 1, P)  packed biases
    x:         (B, INPUTS) f32
    returns    (B, out_dim) f32
    """
    batch, in_dim = x.shape
    num_layers, pad_dim, _ = w_stacked.shape
    itemsize = jnp.dtype(w_stacked.dtype).itemsize
    sublane = 16 if itemsize < 4 else 8     # bf16 packs 16 rows per vreg

    # Batch tile: large enough to amortize per-step overhead; >=2 grid steps when
    # the batch allows it so the "parallel" axis can shard across TCs (v7x).
    if batch > max_batch_tile:
        tile_b = max_batch_tile
    elif batch >= 2 * sublane:
        tile_b = min(_round_up(-(-batch // 2), sublane), max_batch_tile)
    else:
        tile_b = _round_up(batch, sublane)
    batch_p = _round_up(batch, tile_b)

    # Only the batch axis is ever padded (and only if needed); lanes of x stay
    # unpadded — the kernel slices the valid fan-in rows of the first weight.
    x_in = x if batch_p == batch else jnp.pad(x, ((0, batch_p - batch), (0, 0)))

    kernel = functools.partial(_mlp_kernel, num_layers=num_layers, in_dim=in_dim)

    grid = (batch_p // tile_b,)
    flops = 2 * batch_p * pad_dim * pad_dim * num_layers
    bytes_accessed = (x_in.size * x_in.dtype.itemsize
                      + w_stacked.size * itemsize
                      + b_stacked.size * itemsize
                      + batch_p * pad_dim * 4)

    # Explicit VMEM budget: resident weights/biases + double-buffered x/out tiles.
    vmem_needed = ((w_stacked.size + b_stacked.size) * itemsize
                   + 2 * tile_b * in_dim * x_in.dtype.itemsize
                   + 2 * tile_b * pad_dim * 4)
    vmem_limit = int(min(max(2 * vmem_needed, 16 << 20), 64 << 20))

    out_padded = pl.pallas_call(
        kernel,
        out_shape=jax.ShapeDtypeStruct((batch_p, pad_dim), jnp.float32),
        grid_spec=pltpu.PrefetchScalarGridSpec(
            num_scalar_prefetch=0,
            grid=grid,
            in_specs=[
                # Activations stream over the batch grid (last dim == full dim).
                pl.BlockSpec((tile_b, in_dim), lambda i: (i, 0)),
                # Weights & biases: constant block index -> fetched once, resident.
                pl.BlockSpec((num_layers, pad_dim, pad_dim), lambda i: (0, 0, 0)),
                pl.BlockSpec((num_layers, 1, pad_dim), lambda i: (0, 0, 0)),
            ],
            out_specs=pl.BlockSpec((tile_b, pad_dim), lambda i: (i, 0)),
        ),
        compiler_params=pltpu.CompilerParams(
            dimension_semantics=("parallel",),
            vmem_limit_bytes=vmem_limit,
        ),
        cost_estimate=pl.CostEstimate(
            flops=flops, transcendentals=0, bytes_accessed=bytes_accessed),
    )(x_in, w_stacked, b_stacked)

    return out_padded[:batch, :out_dim]


def init_nn_params(key, no_hidden_nodes, no_hidden_layers, inputs, outputs):
    """Deterministic parameter init (uniform, PyTorch-Linear-style bounds).

    Weights stored as (in, out) so the kernel computes y = x @ W + b directly.
    """
    dims = [inputs] + [no_hidden_nodes] * (no_hidden_layers + 1) + [outputs]
    params = []
    for i in range(len(dims) - 1):
        fan_in, fan_out = dims[i], dims[i + 1]
        key, kw, kb = jax.random.split(key, 3)
        bound = 1.0 / jnp.sqrt(fan_in)
        w = jax.random.uniform(kw, (fan_in, fan_out), jnp.float32, -bound, bound)
        b = jax.random.uniform(kb, (1, fan_out), jnp.float32, -bound, bound)
        params.append((w, b))
    return params


if __name__ == "__main__":
    # Small shapes consistent with the module's forward:
    #   batch=8, INPUTS=32, no_hidden_nodes=32, no_hidden_layers=2, OUTPUTS=8
    BATCH, INPUTS, HIDDEN, N_HIDDEN_LAYERS, OUTPUTS = 8, 32, 32, 2, 8

    key = jax.random.PRNGKey(0)
    key, kx = jax.random.split(key)
    x = jax.random.normal(kx, (BATCH, INPUTS), dtype=jnp.float32)

    params = init_nn_params(key, HIDDEN, N_HIDDEN_LAYERS, INPUTS, OUTPUTS)

    # Parameter packing hoisted out of the hot path: done once, reused every call.
    w_stacked, b_stacked = pack_nn_params(params, dtype=jnp.float32)

    fwd = jax.jit(functools.partial(nn_forward_packed, out_dim=OUTPUTS))
    out = jax.block_until_ready(fwd(w_stacked, b_stacked, x))

    # Pure-JAX reference check of the same semantics.
    ref = x
    for i, (w, b) in enumerate(params):
        ref = ref @ w + b
        if i < len(params) - 1:
            ref = jnp.maximum(ref, 0.0)
    assert out.shape == (BATCH, OUTPUTS)
    assert jnp.allclose(out, ref, atol=1e-5, rtol=1e-5)

    print("KERNEL_OK")
</pallas_src>

<mosaic_0001>
module attributes {stable_mosaic.version = 11 : i64} {
  func.func @_mlp_kernel(%arg0: i32, %arg1: memref<8x32xf32, #tpu.memory_space<vmem>>, %arg2: memref<4x128x128xf32, #tpu.memory_space<vmem>>, %arg3: memref<4x1x128xf32, #tpu.memory_space<vmem>>, %arg4: memref<8x128xf32, #tpu.memory_space<vmem>>) attributes {dimension_semantics = [#tpu.dimension_semantics<parallel>], iteration_bounds = array<i64: 1>, scalar_prefetch = 0 : i64, scratch_operands = 0 : i64, tpu.core_type = #tpu.core_type<tc>, window_params = [{transform_indices = @transform_0, window_bounds = array<i64: 8, 32>}, {pipeline_mode = #tpu.pipeline_mode<synchronous>, transform_indices = @transform_1, window_bounds = array<i64: 4, 128, 128>}, {pipeline_mode = #tpu.pipeline_mode<synchronous>, transform_indices = @transform_2, window_bounds = array<i64: 4, 1, 128>}, {transform_indices = @transform_3, window_bounds = array<i64: 8, 128>}]} {
    %c0 = arith.constant 0 : index
    %c0_0 = arith.constant 0 : index
    %0 = vector.load %arg1[%c0, %c0_0] : memref<8x32xf32, #tpu.memory_space<vmem>>, vector<8x32xf32>
    %c0_1 = arith.constant 0 : index
    %c0_2 = arith.constant 0 : index
    %c0_3 = arith.constant 0 : index
    %1 = vector.load %arg2[%c0_1, %c0_2, %c0_3] : memref<4x128x128xf32, #tpu.memory_space<vmem>>, vector<1x32x128xf32>
    %2 = vector.shape_cast %1 : vector<1x32x128xf32> to vector<32x128xf32>
    %cst = arith.constant dense<0.000000e+00> : vector<8x128xf32>
    %3 = tpu.matmul %0, %2, %cst {dimension_numbers = #tpu.dot_dimension_numbers<[1], [0], [0], [1], [0, 0, 1, 1], [], []>} : vector<8x32xf32>, vector<32x128xf32>, vector<8x128xf32> -> vector<8x128xf32>
    %c0_4 = arith.constant 0 : index
    %c0_5 = arith.constant 0 : index
    %c0_6 = arith.constant 0 : index
    %4 = vector.load %arg3[%c0_4, %c0_5, %c0_6] : memref<4x1x128xf32, #tpu.memory_space<vmem>>, vector<1x1x128xf32>
    %5 = vector.shape_cast %4 : vector<1x1x128xf32> to vector<1x128xf32>
    %6 = vector.broadcast %5 : vector<1x128xf32> to vector<8x128xf32>
    %7 = arith.addf %3, %6 : vector<8x128xf32>
    %cst_7 = arith.constant 0.000000e+00 : f32
    %8 = vector.broadcast %cst_7 : f32 to vector<8x128xf32>
    %9 = arith.maximumf %7, %8 : vector<8x128xf32>
    %c1 = arith.constant 1 : index
    %c0_8 = arith.constant 0 : index
    %c0_9 = arith.constant 0 : index
    %10 = vector.load %arg2[%c1, %c0_8, %c0_9] : memref<4x128x128xf32, #tpu.memory_space<vmem>>, vector<1x128x128xf32>
    %11 = vector.shape_cast %10 : vector<1x128x128xf32> to vector<128x128xf32>
    %cst_10 = arith.constant dense<0.000000e+00> : vector<8x128xf32>
    %12 = tpu.matmul %9, %11, %cst_10 {dimension_numbers = #tpu.dot_dimension_numbers<[1], [0], [0], [1], [0, 0, 1, 1], [], []>} : vector<8x128xf32>, vector<128x128xf32>, vector<8x128xf32> -> vector<8x128xf32>
    %c1_11 = arith.constant 1 : index
    %c0_12 = arith.constant 0 : index
    %c0_13 = arith.constant 0 : index
    %13 = vector.load %arg3[%c1_11, %c0_12, %c0_13] : memref<4x1x128xf32, #tpu.memory_space<vmem>>, vector<1x1x128xf32>
    %14 = vector.shape_cast %13 : vector<1x1x128xf32> to vector<1x128xf32>
    %15 = vector.broadcast %14 : vector<1x128xf32> to vector<8x128xf32>
    %16 = arith.addf %12, %15 : vector<8x128xf32>
    %cst_14 = arith.constant 0.000000e+00 : f32
    %17 = vector.broadcast %cst_14 : f32 to vector<8x128xf32>
    %18 = arith.maximumf %16, %17 : vector<8x128xf32>
    %c2 = arith.constant 2 : index
    %c0_15 = arith.constant 0 : index
    %c0_16 = arith.constant 0 : index
    %19 = vector.load %arg2[%c2, %c0_15, %c0_16] : memref<4x128x128xf32, #tpu.memory_space<vmem>>, vector<1x128x128xf32>
    %20 = vector.shape_cast %19 : vector<1x128x128xf32> to vector<128x128xf32>
    %cst_17 = arith.constant dense<0.000000e+00> : vector<8x128xf32>
    %21 = tpu.matmul %18, %20, %cst_17 {dimension_numbers = #tpu.dot_dimension_numbers<[1], [0], [0], [1], [0, 0, 1, 1], [], []>} : vector<8x128xf32>, vector<128x128xf32>, vector<8x128xf32> -> vector<8x128xf32>
    %c2_18 = arith.constant 2 : index
    %c0_19 = arith.constant 0 : index
    %c0_20 = arith.constant 0 : index
    %22 = vector.load %arg3[%c2_18, %c0_19, %c0_20] : memref<4x1x128xf32, #tpu.memory_space<vmem>>, vector<1x1x128xf32>
    %23 = vector.shape_cast %22 : vector<1x1x128xf32> to vector<1x128xf32>
    %24 = vector.broadcast %23 : vector<1x128xf32> to vector<8x128xf32>
    %25 = arith.addf %21, %24 : vector<8x128xf32>
    %cst_21 = arith.constant 0.000000e+00 : f32
    %26 = vector.broadcast %cst_21 : f32 to vector<8x128xf32>
    %27 = arith.maximumf %25, %26 : vector<8x128xf32>
    %c3 = arith.constant 3 : index
    %c0_22 = arith.constant 0 : index
    %c0_23 = arith.constant 0 : index
    %28 = vector.load %arg2[%c3, %c0_22, %c0_23] : memref<4x128x128xf32, #tpu.memory_space<vmem>>, vector<1x128x128xf32>
    %29 = vector.shape_cast %28 : vector<1x128x128xf32> to vector<128x128xf32>
    %cst_24 = arith.constant dense<0.000000e+00> : vector<8x128xf32>
    %30 = tpu.matmul %27, %29, %cst_24 {dimension_numbers = #tpu.dot_dimension_numbers<[1], [0], [0], [1], [0, 0, 1, 1], [], []>} : vector<8x128xf32>, vector<128x128xf32>, vector<8x128xf32> -> vector<8x128xf32>
    %c3_25 = arith.constant 3 : index
    %c0_26 = arith.constant 0 : index
    %c0_27 = arith.constant 0 : index
    %31 = vector.load %arg3[%c3_25, %c0_26, %c0_27] : memref<4x1x128xf32, #tpu.memory_space<vmem>>, vector<1x1x128xf32>
    %32 = vector.shape_cast %31 : vector<1x1x128xf32> to vector<1x128xf32>
    %33 = vector.broadcast %32 : vector<1x128xf32> to vector<8x128xf32>
    %34 = arith.addf %30, %33 : vector<8x128xf32>
    %c0_28 = arith.constant 0 : index
    %c0_29 = arith.constant 0 : index
    %35 = vector.load %arg4[%c0_28, %c0_29] : memref<8x128xf32, #tpu.memory_space<vmem>>, vector<8x128xf32>
    tpu.vector_store %arg4[%c0_28, %c0_29], %34 {strides = array<i32>} : memref<8x128xf32, #tpu.memory_space<vmem>>, vector<8x128xf32>,
    return
  }
  func.func @transform_0(%arg0: i32) -> (i32, i32) {
    %c0_i32 = arith.constant 0 : i32
    %c0_i32_0 = arith.constant 0 : i32
    return %arg0, %c0_i32 : i32, i32
  }
  func.func @transform_1(%arg0: i32) -> (i32, i32, i32) {
    %c0_i32 = arith.constant 0 : i32
    %c0_i32_0 = arith.constant 0 : i32
    %c0_i32_1 = arith.constant 0 : i32
    %c0_i32_2 = arith.constant 0 : i32
    return %c0_i32, %c0_i32_0, %c0_i32_1 : i32, i32, i32
  }
  func.func @transform_2(%arg0: i32) -> (i32, i32, i32) {
    %c0_i32 = arith.constant 0 : i32
    %c0_i32_0 = arith.constant 0 : i32
    %c0_i32_1 = arith.constant 0 : i32
    %c0_i32_2 = arith.constant 0 : i32
    return %c0_i32, %c0_i32_0, %c0_i32_1 : i32, i32, i32
  }
  func.func @transform_3(%arg0: i32) -> (i32, i32) {
    %c0_i32 = arith.constant 0 : i32
    %c0_i32_0 = arith.constant 0 : i32
    return %arg0, %c0_i32 : i32, i32
  }
}

</mosaic_0001>

<llo_original>
// kernel: nn_forward_packed.1
$region0: #{nn_forward_packed.1}
  #allocation0 [shape = 'u32[]', space=smem, size = 0x4, offset = 0x4, fixed_abs, tag = 'smem constant byte address 0x4 - core index']
  #allocation1 [shape = 'u32[144,128]{1,0:T(1,128)}', space=vmem, size = 0x12000, scoped, tag = 'internal scratch']
  %s0 = inlined_call_operand.hbm [shape: f32[8,32], index: 0, kind: input, shape index: {}]
  %s1 = inlined_call_operand.hbm [shape: f32[4,128,128], index: 1, kind: input, shape index: {}]
  %s2 = inlined_call_operand.hbm [shape: f32[4,1,128], index: 2, kind: input, shape index: {}]
  %s3 = inlined_call_operand.hbm [shape: f32[8,128], index: 3, kind: output, shape index: {}]
  %s4 = sld [smem:[#allocation0]]
  $region34: #{nn_forward_packed.1} parent=0
    _
  %s6 = ssub.s32 1, %s4
  %s7 = scalar_select 0, %s6, %s4
  $region1: #{nn_forward_packed.1} parent=0
    #allocation2 [shape = 'u8[4096]{0}', space=vmem, size = 0x1000, scoped, tag = 'input window, operand 0, single buffered']
    #allocation3 [shape = 's32[1]{0}', space=sflag, size = 0x4, scoped, tag = 'scoped memory for nn_forward_packed.1']
    #allocation4 [shape = 's32[1]{0}', space=sflag, size = 0x4, scoped, tag = 'scoped memory for nn_forward_packed.1']
    #allocation5 [shape = 'u8[262144]{0}', space=vmem, size = 0x40000, scoped, tag = 'input window, operand 1, single buffered']
    #allocation6 [shape = 's32[1]{0}', space=sflag, size = 0x4, scoped, tag = 'scoped memory for nn_forward_packed.1']
    #allocation7 [shape = 'u8[2048]{0}', space=vmem, size = 0x800, scoped, tag = 'input window, operand 2, single buffered']
    #allocation8 [shape = 'u8[4096]{0}', space=vmem, size = 0x1000, scoped, tag = 'output window, operand 0, single buffered']
    %8 = vsyncpa [#allocation3], 0
    %9 = vsyncpa [#allocation6], 0
    %10 = vsyncpa [#allocation4], 0
    // Predicated region
    $region2: #{nn_forward_packed.1} parent=1 // pred_check
      _
    $region3: #{nn_forward_packed.1} parent=1 // pred_check_branch
      %12 = sbr.rel (0) target = $region5
    $region4: #{nn_forward_packed.1} parent=1 // pred_region
      %s14 = ssub.s32 128, 128
      %15 = vsyncadd [#allocation3], %s14
      %s17 = sshll.u32 [#allocation2], 4
      %s18 = int_to_ptr.vmem [resolvable:$true] %s17
      %20 = dma.hbm_to_vmem [thread:$0]  %s0, 128, %s18, [#allocation3]
    $region5: #{nn_forward_packed.1} parent=1 // pred_fallthru
      _
    // Predicated region
    $region6: #{nn_forward_packed.1} parent=1 // pred_check
      _
    $region7: #{nn_forward_packed.1} parent=1 // pred_check_branch
      %22 = sbr.rel (0) target = $region9
    $region8: #{nn_forward_packed.1} parent=1 // pred_region
      %s24 = ssub.s32 8192, 8192
      %25 = vsyncadd [#allocation6], %s24
      %s26 = sshll.u32 [#allocation5], 4
      %s27 = int_to_ptr.vmem [resolvable:$true] %s26
      %32 = dma.hbm_to_vmem [thread:$0]  %s1, 8192, %s27, [#allocation6], 128, 128, 8
    $region9: #{nn_forward_packed.1} parent=1 // pred_fallthru
      _
    // Predicated region
    $region10: #{nn_forward_packed.1} parent=1 // pred_check
      _
    $region11: #{nn_forward_packed.1} parent=1 // pred_check_branch
      %34 = sbr.rel (0) target = $region13
    $region12: #{nn_forward_packed.1} parent=1 // pred_region
      %s36 = ssub.s32 64, 64
      %37 = vsyncadd [#allocation6], %s36
      %s38 = sshll.u32 [#allocation7], 4
      %s39 = int_to_ptr.vmem [resolvable:$true] %s38
      %44 = dma.hbm_to_vmem [thread:$0]  %s2, 64, %s39, [#allocation6], 16, 16, 1
    $region13: #{nn_forward_packed.1} parent=1 // pred_fallthru
      _
    // Predicated region
    $region14: #{nn_forward_packed.1} parent=1 // pred_check
      _
    $region15: #{nn_forward_packed.1} parent=1 // pred_check_branch
      %46 = sbr.rel (0) target = $region17
    $region16: #{nn_forward_packed.1} parent=1 // pred_region
      %47 = dma.done [#allocation3], 128
    $region17: #{nn_forward_packed.1} parent=1 // pred_fallthru
      _
    // Predicated region
    $region18: #{nn_forward_packed.1} parent=1 // pred_check
      _
    $region19: #{nn_forward_packed.1} parent=1 // pred_check_branch
      %49 = sbr.rel (0) target = $region21
    $region20: #{nn_forward_packed.1} parent=1 // pred_region
      %50 = dma.done [#allocation6], 8192
    $region21: #{nn_forward_packed.1} parent=1 // pred_fallthru
      _
    // Predicated region
    $region22: #{nn_forward_packed.1} parent=1 // pred_check
      _
    $region23: #{nn_forward_packed.1} parent=1 // pred_check_branch
      %52 = sbr.rel (0) target = $region25
    $region24: #{nn_forward_packed.1} parent=1 // pred_region
      %53 = dma.done [#allocation6], 64
    $region25: #{nn_forward_packed.1} parent=1 // pred_fallthru
      _
    %v54 = vld [vmem:[#allocation2] sm:$0xff]
    %v55 = vld [vmem:[#allocation5] sm:$0xff]
    %v56 = vld [vmem:[#allocation5 + $0x8] sm:$0xff]
    %v57 = vld [vmem:[#allocation5 + $0x10] sm:$0xff]
    %v58 = vld [vmem:[#allocation5 + $0x18] sm:$0xff]
    %v59 = vld [vmem:[#allocation7] sm:$0x1]
    %v61 = vlaneseq
    %v62 = vshrl.u32 %v61, 7
    %v63 = vsub.s32 0, %v62
    %v64 = vrot.slane %v59, %v63
    %vm66 = vcmask 261120
    %v68 = vsel %vm66, %v54, 0
    %70 = vmatprep.subr.mxu0 0.0
    %71 = vmatpush1.msra.mxu0 0.0
    %72 = vmatprep.subr.mxu0 0.0
    %73 = vmatpush1.msra.mxu0 0.0
    %74 = vmatprep.subr.mxu0 0.0
    %75 = vmatpush1.msra.mxu0 0.0
    %76 = vmatprep.subr.mxu0 0.0
    %77 = vmatpush1.msra.mxu0 0.0
    %78 = vmatprep.subr.mxu0 0.0
    %79 = vmatpush1.msra.mxu0 0.0
    %80 = vmatprep.subr.mxu0 0.0
    %81 = vmatpush1.msra.mxu0 0.0
    %82 = vmatprep.subr.mxu0 0.0
    %83 = vmatpush1.msra.mxu0 0.0
    %84 = vmatprep.subr.mxu0 0.0
    %85 = vmatpush1.msra.mxu0 0.0
    %86 = vmatprep.subr.mxu0 0.0
    %87 = vmatpush1.msra.mxu0 0.0
    %88 = vmatprep.subr.mxu0 0.0
    %89 = vmatpush1.msra.mxu0 0.0
    %90 = vmatprep.subr.mxu0 0.0
    %91 = vmatpush1.msra.mxu0 0.0
    %92 = vmatprep.subr.mxu0 0.0
    %93 = vmatpush1.msra.mxu0 0.0
    %94 = vmatprep.subr.mxu0 0.0
    %95 = vmatpush1.msra.mxu0 %v58
    %96 = vmatprep.subr.mxu0 0.0
    %97 = vmatpush1.msra.mxu0 %v57
    %98 = vmatprep.subr.mxu0 0.0
    %99 = vmatpush1.msra.mxu0 %v56
    %100 = vmatprep.subr.mxu0 0.0
    %101 = vmatpush1.msra.mxu0 %v55
    %102 = vmatprep.subr.mxu0 0.0
    %103 = vmatpush2.msra.mxu0 0.0
    %104 = vmatprep.subr.mxu0 0.0
    %105 = vmatpush2.msra.mxu0 0.0
    %106 = vmatprep.subr.mxu0 0.0
    %107 = vmatpush2.msra.mxu0 0.0
    %108 = vmatprep.subr.mxu0 0.0
    %109 = vmatpush2.msra.mxu0 0.0
    %110 = vmatprep.subr.mxu0 0.0
    %111 = vmatpush2.msra.mxu0 0.0
    %112 = vmatprep.subr.mxu0 0.0
    %113 = vmatpush2.msra.mxu0 0.0
    %114 = vmatprep.subr.mxu0 0.0
    %115 = vmatpush2.msra.mxu0 0.0
    %116 = vmatprep.subr.mxu0 0.0
    %117 = vmatpush2.msra.mxu0 0.0
    %118 = vmatprep.subr.mxu0 0.0
    %119 = vmatpush2.msra.mxu0 0.0
    %120 = vmatprep.subr.mxu0 0.0
    %121 = vmatpush2.msra.mxu0 0.0
    %122 = vmatprep.subr.mxu0 0.0
    %123 = vmatpush2.msra.mxu0 0.0
    %124 = vmatprep.subr.mxu0 0.0
    %125 = vmatpush2.msra.mxu0 0.0
    %126 = vmatprep.subr.mxu0 0.0
    %127 = vmatpush2.msra.mxu0 0.0
    %128 = vmatprep.subr.mxu0 0.0
    %129 = vmatpush2.msra.mxu0 0.0
    %130 = vmatprep.subr.mxu0 0.0
    %131 = vmatpush2.msra.mxu0 0.0
    %132 = vmatprep.subr.mxu0 0.0
    %133 = vmatpush2.msra.mxu0 0.0
    %134 = vmatprep.mubr.f32.mxu0 0.0
    %135 = vmatmul.mubr.f32.gmra.mxu0 %v68
    %v136 = vpop.f32.mrf.mxu0
    %v137 = vadd.f32 %v64, %v136
    %v138 = vpop.f32.mrf.mxu0
    %139 = vdwg.mxu0
    %v140 = vmax.f32 %v137, 0.0
    %s141 = scalar_lea.vmem [#allocation5], 128
    %v142 = vld [vmem:[%s141] sm:$0xff]
    %v143 = vld [vmem:[%s141 + $0x8] sm:$0xff]
    %v144 = vld [vmem:[%s141 + $0x10] sm:$0xff]
    %v145 = vld [vmem:[%s141 + $0x18] sm:$0xff]
    %v146 = vld [vmem:[%s141 + $0x20] sm:$0xff]
    %v147 = vld [vmem:[%s141 + $0x28] sm:$0xff]
    %v148 = vld [vmem:[%s141 + $0x30] sm:$0xff]
    %v149 = vld [vmem:[%s141 + $0x38] sm:$0xff]
    %v150 = vld [vmem:[%s141 + $0x40] sm:$0xff]
    %v151 = vld [vmem:[%s141 + $0x48] sm:$0xff]
    %v152 = vld [vmem:[%s141 + $0x50] sm:$0xff]
    %v153 = vld [vmem:[%s141 + $0x58] sm:$0xff]
    %v154 = vld [vmem:[%s141 + $0x60] sm:$0xff]
    %v155 = vld [vmem:[%s141 + $0x68] sm:$0xff]
    %v156 = vld [vmem:[%s141 + $0x70] sm:$0xff]
    %v157 = vld [vmem:[%s141 + $0x78] sm:$0xff]
    %s158 = scalar_lea.vmem [#allocation7], 1
    %v159 = vld [vmem:[%s158] sm:$0x1]
    %v161 = vlaneseq
    %v162 = vshrl.u32 %v161, 7
    %v163 = vsub.s32 0, %v162
    %v164 = vrot.slane %v159, %v163
    %166 = vmatprep.subr.mxu0 0.0
    %167 = vmatpush1.msra.mxu0 %v157
    %168 = vmatprep.subr.mxu0 0.0
    %169 = vmatpush1.msra.mxu0 %v156
    %170 = vmatprep.subr.mxu0 0.0
    %171 = vmatpush1.msra.mxu0 %v155
    %172 = vmatprep.subr.mxu0 0.0
    %173 = vmatpush1.msra.mxu0 %v154
    %174 = vmatprep.subr.mxu0 0.0
    %175 = vmatpush1.msra.mxu0 %v153
    %176 = vmatprep.subr.mxu0 0.0
    %177 = vmatpush1.msra.mxu0 %v152
    %178 = vmatprep.subr.mxu0 0.0
    %179 = vmatpush1.msra.mxu0 %v151
    %180 = vmatprep.subr.mxu0 0.0
    %181 = vmatpush1.msra.mxu0 %v150
    %182 = vmatprep.subr.mxu0 0.0
    %183 = vmatpush1.msra.mxu0 %v149
    %184 = vmatprep.subr.mxu0 0.0
    %185 = vmatpush1.msra.mxu0 %v148
    %186 = vmatprep.subr.mxu0 0.0
    %187 = vmatpush1.msra.mxu0 %v147
    %188 = vmatprep.subr.mxu0 0.0
    %189 = vmatpush1.msra.mxu0 %v146
    %190 = vmatprep.subr.mxu0 0.0
    %191 = vmatpush1.msra.mxu0 %v145
    %192 = vmatprep.subr.mxu0 0.0
    %193 = vmatpush1.msra.mxu0 %v144
    %194 = vmatprep.subr.mxu0 0.0
    %195 = vmatpush1.msra.mxu0 %v143
    %196 = vmatprep.subr.mxu0 0.0
    %197 = vmatpush1.msra.mxu0 %v142
    %198 = vmatprep.subr.mxu0 0.0
    %199 = vmatpush2.msra.mxu0 0.0
    %200 = vmatprep.subr.mxu0 0.0
    %201 = vmatpush2.msra.mxu0 0.0
    %202 = vmatprep.subr.mxu0 0.0
    %203 = vmatpush2.msra.mxu0 0.0
    %204 = vmatprep.subr.mxu0 0.0
    %205 = vmatpush2.msra.mxu0 0.0
    %206 = vmatprep.subr.mxu0 0.0
    %207 = vmatpush2.msra.mxu0 0.0
    %208 = vmatprep.subr.mxu0 0.0
    %209 = vmatpush2.msra.mxu0 0.0
    %210 = vmatprep.subr.mxu0 0.0
    %211 = vmatpush2.msra.mxu0 0.0
    %212 = vmatprep.subr.mxu0 0.0
    %213 = vmatpush2.msra.mxu0 0.0
    %214 = vmatprep.subr.mxu0 0.0
    %215 = vmatpush2.msra.mxu0 0.0
    %216 = vmatprep.subr.mxu0 0.0
    %217 = vmatpush2.msra.mxu0 0.0
    %218 = vmatprep.subr.mxu0 0.0
    %219 = vmatpush2.msra.mxu0 0.0
    %220 = vmatprep.subr.mxu0 0.0
    %221 = vmatpush2.msra.mxu0 0.0
    %222 = vmatprep.subr.mxu0 0.0
    %223 = vmatpush2.msra.mxu0 0.0
    %224 = vmatprep.subr.mxu0 0.0
    %225 = vmatpush2.msra.mxu0 0.0
    %226 = vmatprep.subr.mxu0 0.0
    %227 = vmatpush2.msra.mxu0 0.0
    %228 = vmatprep.subr.mxu0 0.0
    %229 = vmatpush2.msra.mxu0 0.0
    %230 = vmatprep.mubr.f32.mxu0 0.0
    %231 = vmatmul.mubr.f32.gmra.mxu0 %v140
    %v232 = vpop.f32.mrf.mxu0
    %v233 = vadd.f32 %v164, %v232
    %v234 = vpop.f32.mrf.mxu0
    %235 = vdwg.mxu0
    %v236 = vmax.f32 %v233, 0.0
    %s237 = scalar_lea.vmem [#allocation5], 256
    %v238 = vld [vmem:[%s237] sm:$0xff]
    %v239 = vld [vmem:[%s237 + $0x8] sm:$0xff]
    %v240 = vld [vmem:[%s237 + $0x10] sm:$0xff]
    %v241 = vld [vmem:[%s237 + $0x18] sm:$0xff]
    %v242 = vld [vmem:[%s237 + $0x20] sm:$0xff]
    %v243 = vld [vmem:[%s237 + $0x28] sm:$0xff]
    %v244 = vld [vmem:[%s237 + $0x30] sm:$0xff]
    %v245 = vld [vmem:[%s237 + $0x38] sm:$0xff]
    %v246 = vld [vmem:[%s237 + $0x40] sm:$0xff]
    %v247 = vld [vmem:[%s237 + $0x48] sm:$0xff]
    %v248 = vld [vmem:[%s237 + $0x50] sm:$0xff]
    %v249 = vld [vmem:[%s237 + $0x58] sm:$0xff]
    %v250 = vld [vmem:[%s237 + $0x60] sm:$0xff]
    %v251 = vld [vmem:[%s237 + $0x68] sm:$0xff]
    %v252 = vld [vmem:[%s237 + $0x70] sm:$0xff]
    %v253 = vld [vmem:[%s237 + $0x78] sm:$0xff]
    %s254 = scalar_lea.vmem [#allocation7], 2
    %v255 = vld [vmem:[%s254] sm:$0x1]
    %v257 = vlaneseq
    %v258 = vshrl.u32 %v257, 7
    %v259 = vsub.s32 0, %v258
    %v260 = vrot.slane %v255, %v259
    %262 = vmatprep.subr.mxu0 0.0
    %263 = vmatpush1.msra.mxu0 %v253
    %264 = vmatprep.subr.mxu0 0.0
    %265 = vmatpush1.msra.mxu0 %v252
    %266 = vmatprep.subr.mxu0 0.0
    %267 = vmatpush1.msra.mxu0 %v251
    %268 = vmatprep.subr.mxu0 0.0
    %269 = vmatpush1.msra.mxu0 %v250
    %270 = vmatprep.subr.mxu0 0.0
    %271 = vmatpush1.msra.mxu0 %v249
    %272 = vmatprep.subr.mxu0 0.0
    %273 = vmatpush1.msra.mxu0 %v248
    %274 = vmatprep.subr.mxu0 0.0
    %275 = vmatpush1.msra.mxu0 %v247
    %276 = vmatprep.subr.mxu0 0.0
    %277 = vmatpush1.msra.mxu0 %v246
    %278 = vmatprep.subr.mxu0 0.0
    %279 = vmatpush1.msra.mxu0 %v245
    %280 = vmatprep.subr.mxu0 0.0
    %281 = vmatpush1.msra.mxu0 %v244
    %282 = vmatprep.subr.mxu0 0.0
    %283 = vmatpush1.msra.mxu0 %v243
    %284 = vmatprep.subr.mxu0 0.0
    %285 = vmatpush1.msra.mxu0 %v242
    %286 = vmatprep.subr.mxu0 0.0
    %287 = vmatpush1.msra.mxu0 %v241
    %288 = vmatprep.subr.mxu0 0.0
    %289 = vmatpush1.msra.mxu0 %v240
    %290 = vmatprep.subr.mxu0 0.0
    %291 = vmatpush1.msra.mxu0 %v239
    %292 = vmatprep.subr.mxu0 0.0
    %293 = vmatpush1.msra.mxu0 %v238
    %294 = vmatprep.subr.mxu0 0.0
    %295 = vmatpush2.msra.mxu0 0.0
    %296 = vmatprep.subr.mxu0 0.0
    %297 = vmatpush2.msra.mxu0 0.0
    %298 = vmatprep.subr.mxu0 0.0
    %299 = vmatpush2.msra.mxu0 0.0
    %300 = vmatprep.subr.mxu0 0.0
    %301 = vmatpush2.msra.mxu0 0.0
    %302 = vmatprep.subr.mxu0 0.0
    %303 = vmatpush2.msra.mxu0 0.0
    %304 = vmatprep.subr.mxu0 0.0
    %305 = vmatpush2.msra.mxu0 0.0
    %306 = vmatprep.subr.mxu0 0.0
    %307 = vmatpush2.msra.mxu0 0.0
    %308 = vmatprep.subr.mxu0 0.0
    %309 = vmatpush2.msra.mxu0 0.0
    %310 = vmatprep.subr.mxu0 0.0
    %311 = vmatpush2.msra.mxu0 0.0
    %312 = vmatprep.subr.mxu0 0.0
    %313 = vmatpush2.msra.mxu0 0.0
    %314 = vmatprep.subr.mxu0 0.0
    %315 = vmatpush2.msra.mxu0 0.0
    %316 = vmatprep.subr.mxu0 0.0
    %317 = vmatpush2.msra.mxu0 0.0
    %318 = vmatprep.subr.mxu0 0.0
    %319 = vmatpush2.msra.mxu0 0.0
    %320 = vmatprep.subr.mxu0 0.0
    %321 = vmatpush2.msra.mxu0 0.0
    %322 = vmatprep.subr.mxu0 0.0
    %323 = vmatpush2.msra.mxu0 0.0
    %324 = vmatprep.subr.mxu0 0.0
    %325 = vmatpush2.msra.mxu0 0.0
    %326 = vmatprep.mubr.f32.mxu0 0.0
    %327 = vmatmul.mubr.f32.gmra.mxu0 %v236
    %v328 = vpop.f32.mrf.mxu0
    %v329 = vadd.f32 %v260, %v328
    %v330 = vpop.f32.mrf.mxu0
    %331 = vdwg.mxu0
    %v332 = vmax.f32 %v329, 0.0
    %s333 = scalar_lea.vmem [#allocation5], 384
    %v334 = vld [vmem:[%s333] sm:$0xff]
    %v335 = vld [vmem:[%s333 + $0x8] sm:$0xff]
    %v336 = vld [vmem:[%s333 + $0x10] sm:$0xff]
    %v337 = vld [vmem:[%s333 + $0x18] sm:$0xff]
    %v338 = vld [vmem:[%s333 + $0x20] sm:$0xff]
    %v339 = vld [vmem:[%s333 + $0x28] sm:$0xff]
    %v340 = vld [vmem:[%s333 + $0x30] sm:$0xff]
    %v341 = vld [vmem:[%s333 + $0x38] sm:$0xff]
    %v342 = vld [vmem:[%s333 + $0x40] sm:$0xff]
    %v343 = vld [vmem:[%s333 + $0x48] sm:$0xff]
    %v344 = vld [vmem:[%s333 + $0x50] sm:$0xff]
    %v345 = vld [vmem:[%s333 + $0x58] sm:$0xff]
    %v346 = vld [vmem:[%s333 + $0x60] sm:$0xff]
    %v347 = vld [vmem:[%s333 + $0x68] sm:$0xff]
    %v348 = vld [vmem:[%s333 + $0x70] sm:$0xff]
    %v349 = vld [vmem:[%s333 + $0x78] sm:$0xff]
    %s350 = scalar_lea.vmem [#allocation7], 3
    %v351 = vld [vmem:[%s350] sm:$0x1]
    %v353 = vlaneseq
    %v354 = vshrl.u32 %v353, 7
    %v355 = vsub.s32 0, %v354
    %v356 = vrot.slane %v351, %v355
    %358 = vmatprep.subr.mxu0 0.0
    %359 = vmatpush1.msra.mxu0 %v349
    %360 = vmatprep.subr.mxu0 0.0
    %361 = vmatpush1.msra.mxu0 %v348
    %362 = vmatprep.subr.mxu0 0.0
    %363 = vmatpush1.msra.mxu0 %v347
    %364 = vmatprep.subr.mxu0 0.0
    %365 = vmatpush1.msra.mxu0 %v346
    %366 = vmatprep.subr.mxu0 0.0
    %367 = vmatpush1.msra.mxu0 %v345
    %368 = vmatprep.subr.mxu0 0.0
    %369 = vmatpush1.msra.mxu0 %v344
    %370 = vmatprep.subr.mxu0 0.0
    %371 = vmatpush1.msra.mxu0 %v343
    %372 = vmatprep.subr.mxu0 0.0
    %373 = vmatpush1.msra.mxu0 %v342
    %374 = vmatprep.subr.mxu0 0.0
    %375 = vmatpush1.msra.mxu0 %v341
    %376 = vmatprep.subr.mxu0 0.0
    %377 = vmatpush1.msra.mxu0 %v340
    %378 = vmatprep.subr.mxu0 0.0
    %379 = vmatpush1.msra.mxu0 %v339
    %380 = vmatprep.subr.mxu0 0.0
    %381 = vmatpush1.msra.mxu0 %v338
    %382 = vmatprep.subr.mxu0 0.0
    %383 = vmatpush1.msra.mxu0 %v337
    %384 = vmatprep.subr.mxu0 0.0
    %385 = vmatpush1.msra.mxu0 %v336
    %386 = vmatprep.subr.mxu0 0.0
    %387 = vmatpush1.msra.mxu0 %v335
    %388 = vmatprep.subr.mxu0 0.0
    %389 = vmatpush1.msra.mxu0 %v334
    %390 = vmatprep.subr.mxu0 0.0
    %391 = vmatpush2.msra.mxu0 0.0
    %392 = vmatprep.subr.mxu0 0.0
    %393 = vmatpush2.msra.mxu0 0.0
    %394 = vmatprep.subr.mxu0 0.0
    %395 = vmatpush2.msra.mxu0 0.0
    %396 = vmatprep.subr.mxu0 0.0
    %397 = vmatpush2.msra.mxu0 0.0
    %398 = vmatprep.subr.mxu0 0.0
    %399 = vmatpush2.msra.mxu0 0.0
    %400 = vmatprep.subr.mxu0 0.0
    %401 = vmatpush2.msra.mxu0 0.0
    %402 = vmatprep.subr.mxu0 0.0
    %403 = vmatpush2.msra.mxu0 0.0
    %404 = vmatprep.subr.mxu0 0.0
    %405 = vmatpush2.msra.mxu0 0.0
    %406 = vmatprep.subr.mxu0 0.0
    %407 = vmatpush2.msra.mxu0 0.0
    %408 = vmatprep.subr.mxu0 0.0
    %409 = vmatpush2.msra.mxu0 0.0
    %410 = vmatprep.subr.mxu0 0.0
    %411 = vmatpush2.msra.mxu0 0.0
    %412 = vmatprep.subr.mxu0 0.0
    %413 = vmatpush2.msra.mxu0 0.0
    %414 = vmatprep.subr.mxu0 0.0
    %415 = vmatpush2.msra.mxu0 0.0
    %416 = vmatprep.subr.mxu0 0.0
    %417 = vmatpush2.msra.mxu0 0.0
    %418 = vmatprep.subr.mxu0 0.0
    %419 = vmatpush2.msra.mxu0 0.0
    %420 = vmatprep.subr.mxu0 0.0
    %421 = vmatpush2.msra.mxu0 0.0
    %422 = vmatprep.mubr.f32.mxu0 0.0
    %423 = vmatmul.mubr.f32.gmra.mxu0 %v332
    %v424 = vpop.f32.mrf.mxu0
    %v425 = vadd.f32 %v356, %v424
    %v426 = vpop.f32.mrf.mxu0
    %427 = vdwg.mxu0
    %428 = vst [vmem:[#allocation8] sm:$0xff] %v425
    // Predicated region
    $region26: #{nn_forward_packed.1} parent=1 // pred_check
      _
    $region27: #{nn_forward_packed.1} parent=1 // pred_check_branch
      %430 = sbr.rel (0) target = $region29
    $region28: #{nn_forward_packed.1} parent=1 // pred_region
      %s432 = ssub.s32 128, 128
      %433 = vsyncadd [#allocation4], %s432
      %s435 = sshll.u32 [#allocation8], 4
      %s436 = int_to_ptr.vmem [resolvable:$true] %s435
      %438 = dma.vmem_to_hbm [thread:$0]  %s436, 128, %s3, [#allocation4]
    $region29: #{nn_forward_packed.1} parent=1 // pred_fallthru
      _
    // Predicated region
    $region30: #{nn_forward_packed.1} parent=1 // pred_check
      _
    $region31: #{nn_forward_packed.1} parent=1 // pred_check_branch
      %440 = sbr.rel (0) target = $region33
    $region32: #{nn_forward_packed.1} parent=1 // pred_region
      %441 = dma.done [#allocation4], 128
    $region33: #{nn_forward_packed.1} parent=1 // pred_fallthru
      _
    %442 = vsyncpa [#allocation3], 1
    %443 = vsyncpa [#allocation6], 1
    %444 = vsyncpa [#allocation4], 1

</llo_original>
